<compile_context>
chip_gen: v5e
topology: v5e:2x2
jax: 0.10.0
libtpu: 0.0.40
codegen_flags: <defaults>
</compile_context>

<pallas_src>
import jax
import jax.numpy as jnp
from jax.experimental import pallas as pl
from jax.experimental.pallas import tpu as pltpu

N_H1 = 50        # Hnet hidden width   (Linear(2, 50))
N_H2 = 25        # dnet hidden width   (Linear(1, 25))
NSUB = 80        # fused hidden rows: 0..49 Hnet, 50..74 dnet, 75..79 zero pad
CHUNK = 128      # lane width of one vreg / one inner chunk
NPANEL = 5       # weight panels: [wq | wp | bias | w2 | a2]
DEFAULT_TILE_LANES = 512   # batch states per grid step (multiple of CHUNK)


def phs_kernel(w_ref, c2_ref, x_ref, dx_ref):
    """One batch tile of port-Hamiltonian dynamics (batch on lanes).

    w_ref  : (NSUB, NPANEL*CHUNK) VMEM slab; panel p = lanes [p*128,(p+1)*128)
             panel 0: coef of q   (w1[:,0] on Hnet rows, 0 elsewhere)
             panel 1: coef of p   (w1[:,1] on Hnet rows, a1 on dnet rows)
             panel 2: bias        (b1 on Hnet rows, c1 on dnet rows)
             panel 3: w2          (Hnet head; 0 on dnet/pad rows)
             panel 4: a2          (dnet head; 0 on Hnet/pad rows)
    c2_ref : (1,) f32 in SMEM (dnet output bias)
    x_ref  : (2, tile_lanes)  row 0 = q values, row 1 = p values
    dx_ref : (2, tile_lanes)  row 0 = dq/dt,    row 1 = dp/dt
    """
    c2 = c2_ref[0]
    n_chunks = x_ref.shape[1] // CHUNK        # static at trace time

    def chunk_body(c, carry):
        off = pl.multiple_of(c * CHUNK, CHUNK)
        q = x_ref[0:1, pl.ds(off, CHUNK)]     # (1, 128)
        p = x_ref[1:2, pl.ds(off, CHUNK)]     # (1, 128)

        # Weight panels are loaded per chunk (plain VMEM vld, 3/cycle) rather
        # than hoisted, so ~50 weight vregs are never live across chunks.
        wq = w_ref[:, 0 * CHUNK:1 * CHUNK]    # (NSUB, 128)
        wp = w_ref[:, 1 * CHUNK:2 * CHUNK]
        wb = w_ref[:, 2 * CHUNK:3 * CHUNK]
        w2 = w_ref[:, 3 * CHUNK:4 * CHUNK]
        a2 = w_ref[:, 4 * CHUNK:5 * CHUNK]

        # Fused Hnet+dnet pre-activation: one tanh serves both nets (EUP once).
        pre = wq * q + wp * p + wb            # (NSUB, 128) broadcast FMAs (VPU)
        h = jnp.tanh(pre)                     # EUP; padded rows give tanh(0)=0

        # Analytic input-gradient of H (what DerivNet returns):
        #   dH/dx_k = sum_j (1 - h_j^2) * w2_j * w1[j, k]
        # w2 panel is zero on dnet/pad rows -> sums stay exact.
        g = (1.0 - h * h) * w2                            # (NSUB, 128)
        dH_dq = jnp.sum(g * wq, axis=0, keepdims=True)    # (1, 128) sublane red.
        dH_dp = jnp.sum(g * wp, axis=0, keepdims=True)    # (1, 128)
        # (H itself is unused by PHS_Func.forward, so it is never computed.)

        # dnet(p): a2 panel is zero on Hnet/pad rows.
        sd = jnp.sum(h * a2, axis=0, keepdims=True) + c2  # (1, 128)

        # Two full-width lane-dense row stores (no lane-masked vst.msk).
        dx_ref[0:1, pl.ds(off, CHUNK)] = dH_dp
        dx_ref[1:2, pl.ds(off, CHUNK)] = -dH_dq - sd * sd * dH_dp
        return carry

    jax.lax.fori_loop(0, n_chunks, chunk_body, 0, unroll=True)


def init_params(key):
    """Deterministic parameter init matching the PyTorch module shapes."""
    ks = jax.random.split(key, 8)
    w1 = 0.3 * jax.random.normal(ks[0], (N_H1, 2), jnp.float32)   # Linear(2, 50)
    b1 = 0.1 * jax.random.normal(ks[1], (N_H1,), jnp.float32)
    w2 = 0.3 * jax.random.normal(ks[2], (1, N_H1), jnp.float32)   # Linear(50, 1)
    b2 = 0.1 * jax.random.normal(ks[3], (1,), jnp.float32)        # unused by forward
    a1 = 0.3 * jax.random.normal(ks[4], (N_H2, 1), jnp.float32)   # Linear(1, 25)
    c1 = 0.1 * jax.random.normal(ks[5], (N_H2,), jnp.float32)
    a2 = 0.3 * jax.random.normal(ks[6], (1, N_H2), jnp.float32)   # Linear(25, 1)
    c2 = 0.1 * jax.random.normal(ks[7], (1,), jnp.float32)
    return (w1, b1, w2, b2, a1, c1, a2, c2)


def pack_params(params):
    """Pack kernel-visible parameters once, outside the hot path.

    Returns (slab, c2):
      slab : (NSUB, NPANEL*CHUNK) f32, lane-broadcast zero-padded panels
      c2   : (1,) f32 scalar for SMEM
    Hot-path callers should call this once per parameter update and pass the
    packed slab to `phs_dx_cols` directly.
    """
    w1, b1, w2, b2, a1, c1, a2, c2 = params
    del b2  # the H forward head is never used by PHS_Func.forward
    col = jnp.zeros((NSUB, NPANEL), jnp.float32)
    col = col.at[:N_H1, 0].set(w1[:, 0])                     # coef of q (Hnet)
    col = col.at[:N_H1, 1].set(w1[:, 1])                     # coef of p (Hnet)
    col = col.at[N_H1:N_H1 + N_H2, 1].set(a1[:, 0])          # coef of p (dnet)
    col = col.at[:N_H1, 2].set(b1)                           # bias (Hnet)
    col = col.at[N_H1:N_H1 + N_H2, 2].set(c1)                # bias (dnet)
    col = col.at[:N_H1, 3].set(w2[0])                        # Hnet head
    col = col.at[N_H1:N_H1 + N_H2, 4].set(a2[0])             # dnet head
    slab = jnp.broadcast_to(col[:, :, None], (NSUB, NPANEL, CHUNK))
    slab = slab.reshape(NSUB, NPANEL * CHUNK)
    return slab, c2.astype(jnp.float32)


def _phs_pallas_call(w_slab, c2, x_cols, tile_lanes):
    """pallas_call over (2, B) state columns; 'parallel' grid over batch tiles."""
    b = x_cols.shape[1]
    return pl.pallas_call(
        phs_kernel,
        out_shape=jax.ShapeDtypeStruct((2, b), jnp.float32),
        grid_spec=pltpu.PrefetchScalarGridSpec(
            num_scalar_prefetch=0,
            grid=(b // tile_lanes,),
            in_specs=[
                # Constant index_map -> pipeliner copies the slab once and
                # keeps it VMEM-resident across all grid steps (no re-DMA).
                pl.BlockSpec((NSUB, NPANEL * CHUNK), lambda i: (0, 0)),
                pl.BlockSpec(memory_space=pltpu.MemorySpace.SMEM),   # c2 scalar
                pl.BlockSpec((2, tile_lanes), lambda i: (0, i)),
            ],
            out_specs=pl.BlockSpec((2, tile_lanes), lambda i: (0, i)),
        ),
        compiler_params=pltpu.CompilerParams(
            dimension_semantics=("parallel",)),
    )(w_slab, c2, x_cols)


def _phs_dx_cols(t, x_cols, w_slab, c2, *, tile_lanes=DEFAULT_TILE_LANES):
    """Hot-path entry: x_cols (2, B) columns [q; p] -> dx (2, B)."""
    del t  # unused, as in the PyTorch forward
    b = x_cols.shape[1]
    n_chunks = -(-b // CHUNK)
    # Cap the block so the batch grid keeps >= 2 steps whenever n_chunks >= 2
    # (both v7x TensorCores get work); tiny batches fall back to one step.
    cpt = max(1, min(tile_lanes // CHUNK, (n_chunks + 1) // 2))
    tl = cpt * CHUNK
    grid_n = -(-b // tl)
    b_pad = grid_n * tl
    if b_pad != b:
        x_cols = jnp.pad(x_cols, ((0, 0), (0, b_pad - b)))
    out = _phs_pallas_call(w_slab, c2, x_cols, tl)
    return out[:, :b] if b_pad != b else out


phs_dx_cols = jax.jit(_phs_dx_cols, static_argnames=("tile_lanes",))


@jax.jit
def phs_func_batched(t, xs, params):
    """Convenience: xs (B, 2) rows [q, p] -> dx (B, 2).

    Packs the weight slab per call; truly hot-path callers should pack once
    with pack_params() and call phs_dx_cols on (2, B) columns directly.
    """
    w_slab, c2 = pack_params(params)
    return _phs_dx_cols(t, xs.T, w_slab, c2).T


@jax.jit
def phs_func(t, x, params):
    """PyTorch-signature shim: x (2, 1) column -> dx (2, 1) column."""
    w_slab, c2 = pack_params(params)
    return _phs_dx_cols(t, x, w_slab, c2)


def phs_ref_batched(t, xs, params):
    """Pure-JAX reference mirroring the PyTorch semantics exactly (rows API)."""
    del t
    w1, b1, w2, b2, a1, c1, a2, c2 = params
    h = jnp.tanh(xs @ w1.T + b1)                  # (B, 50)
    dHdx = ((1.0 - h * h) * w2) @ w1              # (B, 2)
    hd = jnp.tanh(xs[:, 1:2] @ a1.T + c1)         # (B, 25)
    sd = hd @ a2.T + c2                           # (B, 1)
    dx0 = dHdx[:, 1:2]
    dx1 = -dHdx[:, 0:1] - sd * sd * dHdx[:, 1:2]
    return jnp.concatenate([dx0, dx1], axis=-1)


def phs_ref(t, x, params):
    return phs_ref_batched(t, x.T, params).T      # (2, 1)


if __name__ == "__main__":
    key = jax.random.PRNGKey(0)
    pkey, xkey = jax.random.split(key)
    params = init_params(pkey)
    t = jnp.float32(0.0)

    # --- single-state call (exact PyTorch signature: (2,1) -> (2,1)) -------
    x = jax.random.normal(xkey, (2, 1), jnp.float32)
    dx = jax.block_until_ready(phs_func(t, x, params))
    dx_ref = phs_ref(t, x, params)
    assert dx.shape == (2, 1)
    assert jnp.allclose(dx, dx_ref, atol=1e-5, rtol=1e-5), (dx, dx_ref)

    # --- batched rows API (exercises the lane-padding path) ----------------
    B = 300
    xs = jax.random.normal(jax.random.PRNGKey(1), (B, 2), jnp.float32)
    dxs = jax.block_until_ready(phs_func_batched(t, xs, params))
    dxs_ref = phs_ref_batched(t, xs, params)
    assert dxs.shape == (B, 2)
    assert jnp.allclose(dxs, dxs_ref, atol=1e-5, rtol=1e-5)

    # --- hot-path columns API: pre-packed weights, grid of >= 2 tiles ------
    w_slab, c2 = pack_params(params)
    B2 = 1024
    xc = jax.random.normal(jax.random.PRNGKey(2), (2, B2), jnp.float32)
    dxc = jax.block_until_ready(phs_dx_cols(t, xc, w_slab, c2))
    dxc_ref = phs_ref_batched(t, xc.T, params).T
    assert dxc.shape == (2, B2)
    assert jnp.allclose(dxc, dxc_ref, atol=1e-5, rtol=1e-5)

    print("KERNEL_OK")
</pallas_src>

<mosaic_0001>
module attributes {stable_mosaic.version = 11 : i64} {
  func.func @phs_kernel(%arg0: i32, %arg1: memref<80x640xf32, #tpu.memory_space<vmem>>, %arg2: memref<1xf32, #tpu.memory_space<smem>>, %arg3: memref<2x128xf32, #tpu.memory_space<vmem>>, %arg4: memref<2x128xf32, #tpu.memory_space<vmem>>) attributes {dimension_semantics = [#tpu.dimension_semantics<parallel>], iteration_bounds = array<i64: 1>, scalar_prefetch = 0 : i64, scratch_operands = 0 : i64, tpu.core_type = #tpu.core_type<tc>, window_params = [{pipeline_mode = #tpu.pipeline_mode<synchronous>, transform_indices = @transform_0, window_bounds = array<i64: 80, 640>}, {transform_indices = @transform_1, window_bounds = array<i64: 1>}, {transform_indices = @transform_2, window_bounds = array<i64: 2, 128>}, {transform_indices = @transform_3, window_bounds = array<i64: 2, 128>}]} {
    %c0 = arith.constant 0 : index
    %0 = memref.load %arg2[%c0] : memref<1xf32, #tpu.memory_space<smem>>
    %c0_i32 = arith.constant 0 : i32
    %c128_i32 = arith.constant 128 : i32
    %1 = arith.muli %c0_i32, %c128_i32 : i32
    %2 = tpu.assume_multiple %1, 128 : i32
    %c0_0 = arith.constant 0 : index
    %3 = arith.index_cast %2 : i32 to index
    %4 = vector.load %arg3[%c0_0, %3] : memref<2x128xf32, #tpu.memory_space<vmem>>, vector<1x128xf32>
    %c1 = arith.constant 1 : index
    %5 = arith.index_cast %2 : i32 to index
    %6 = vector.load %arg3[%c1, %5] : memref<2x128xf32, #tpu.memory_space<vmem>>, vector<1x128xf32>
    %c0_1 = arith.constant 0 : index
    %c0_2 = arith.constant 0 : index
    %7 = vector.load %arg1[%c0_1, %c0_2] : memref<80x640xf32, #tpu.memory_space<vmem>>, vector<80x128xf32>
    %c0_3 = arith.constant 0 : index
    %c128 = arith.constant 128 : index
    %8 = vector.load %arg1[%c0_3, %c128] : memref<80x640xf32, #tpu.memory_space<vmem>>, vector<80x128xf32>
    %c0_4 = arith.constant 0 : index
    %c256 = arith.constant 256 : index
    %9 = vector.load %arg1[%c0_4, %c256] : memref<80x640xf32, #tpu.memory_space<vmem>>, vector<80x128xf32>
    %c0_5 = arith.constant 0 : index
    %c384 = arith.constant 384 : index
    %10 = vector.load %arg1[%c0_5, %c384] : memref<80x640xf32, #tpu.memory_space<vmem>>, vector<80x128xf32>
    %c0_6 = arith.constant 0 : index
    %c512 = arith.constant 512 : index
    %11 = vector.load %arg1[%c0_6, %c512] : memref<80x640xf32, #tpu.memory_space<vmem>>, vector<80x128xf32>
    %12 = vector.broadcast %4 : vector<1x128xf32> to vector<80x128xf32>
    %13 = arith.mulf %7, %12 : vector<80x128xf32>
    %14 = vector.broadcast %6 : vector<1x128xf32> to vector<80x128xf32>
    %15 = arith.mulf %8, %14 : vector<80x128xf32>
    %16 = arith.addf %13, %15 : vector<80x128xf32>
    %17 = arith.addf %16, %9 : vector<80x128xf32>
    %18 = math.tanh %17 : vector<80x128xf32>
    %19 = arith.mulf %18, %18 : vector<80x128xf32>
    %cst = arith.constant 1.000000e+00 : f32
    %20 = vector.broadcast %cst : f32 to vector<80x128xf32>
    %21 = arith.subf %20, %19 : vector<80x128xf32>
    %22 = arith.mulf %21, %10 : vector<80x128xf32>
    %23 = arith.mulf %22, %7 : vector<80x128xf32>
    %cst_7 = arith.constant dense<0.000000e+00> : vector<128xf32>
    %24 = vector.multi_reduction <add>, %23, %cst_7 [0] : vector<80x128xf32> to vector<128xf32>
    %25 = vector.shape_cast %24 : vector<128xf32> to vector<1x128xf32>
    %26 = arith.mulf %22, %8 : vector<80x128xf32>
    %cst_8 = arith.constant dense<0.000000e+00> : vector<128xf32>
    %27 = vector.multi_reduction <add>, %26, %cst_8 [0] : vector<80x128xf32> to vector<128xf32>
    %28 = vector.shape_cast %27 : vector<128xf32> to vector<1x128xf32>
    %29 = arith.mulf %18, %11 : vector<80x128xf32>
    %cst_9 = arith.constant dense<0.000000e+00> : vector<128xf32>
    %30 = vector.multi_reduction <add>, %29, %cst_9 [0] : vector<80x128xf32> to vector<128xf32>
    %31 = vector.shape_cast %30 : vector<128xf32> to vector<1x128xf32>
    %32 = vector.broadcast %0 : f32 to vector<1x128xf32>
    %33 = arith.addf %31, %32 : vector<1x128xf32>
    %c0_10 = arith.constant 0 : index
    %34 = arith.index_cast %2 : i32 to index
    %35 = vector.load %arg4[%c0_10, %34] : memref<2x128xf32, #tpu.memory_space<vmem>>, vector<1x128xf32>
    tpu.vector_store %arg4[%c0_10, %34], %28 {strides = array<i32>} : memref<2x128xf32, #tpu.memory_space<vmem>>, vector<1x128xf32>,
    %cst_11 = arith.constant 0.000000e+00 : f32
    %36 = vector.broadcast %cst_11 : f32 to vector<1x128xf32>
    %37 = arith.subf %36, %25 : vector<1x128xf32>
    %38 = arith.mulf %33, %33 : vector<1x128xf32>
    %39 = arith.mulf %38, %28 : vector<1x128xf32>
    %40 = arith.subf %37, %39 : vector<1x128xf32>
    %c1_12 = arith.constant 1 : index
    %41 = arith.index_cast %2 : i32 to index
    %42 = vector.load %arg4[%c1_12, %41] : memref<2x128xf32, #tpu.memory_space<vmem>>, vector<1x128xf32>
    tpu.vector_store %arg4[%c1_12, %41], %40 {strides = array<i32>} : memref<2x128xf32, #tpu.memory_space<vmem>>, vector<1x128xf32>,
    %c1_i32 = arith.constant 1 : i32
    return
  }
  func.func @transform_0(%arg0: i32) -> (i32, i32) {
    %c0_i32 = arith.constant 0 : i32
    %c0_i32_0 = arith.constant 0 : i32
    %c0_i32_1 = arith.constant 0 : i32
    return %c0_i32, %c0_i32_0 : i32, i32
  }
  func.func @transform_1(%arg0: i32) -> i32 {
    %c0_i32 = arith.constant 0 : i32
    %c0_i32_0 = arith.constant 0 : i32
    return %c0_i32 : i32
  }
  func.func @transform_2(%arg0: i32) -> (i32, i32) {
    %c0_i32 = arith.constant 0 : i32
    %c0_i32_0 = arith.constant 0 : i32
    return %c0_i32, %arg0 : i32, i32
  }
  func.func @transform_3(%arg0: i32) -> (i32, i32) {
    %c0_i32 = arith.constant 0 : i32
    %c0_i32_0 = arith.constant 0 : i32
    return %c0_i32, %arg0 : i32, i32
  }
}

</mosaic_0001>

<llo_original>
// kernel: phs_func.1
$region0: #{phs_func.1}
  #allocation0 [shape = 'u32[]', space=smem, size = 0x4, offset = 0x4, fixed_abs, tag = 'smem constant byte address 0x4 - core index']
  #allocation1 [shape = 'u32[72,128]{1,0:T(1,128)}', space=vmem, size = 0x9000, scoped, tag = 'internal scratch']
  #allocation2 [shape = 'f32[1]{0:T(128)S(6)}', space=smem, size = 0x200, scoped, tag = 'scoped memory for phs_func.1']
  %s0 = inlined_call_operand.vmem [shape: f32[80,640], index: 0, kind: input, shape index: {}]
  %s1 = inlined_call_operand.<no memory space> [shape: f32[1], index: 1, kind: input, shape index: {}]
  %s2 = inlined_call_operand.vmem [shape: f32[2,128], index: 2, kind: input, shape index: {}]
  %s3 = inlined_call_operand.vmem [shape: f32[2,128], index: 3, kind: output, shape index: {}]
  %s4 = sld [smem:[#allocation0]]
  $region22: #{phs_func.1} parent=0
    _
  %s6 = ssub.s32 1, %s4
  %s7 = scalar_select 0, %s6, %s4
  %8 = sst [smem:[#allocation2]] %s1
  // Predicated region
  $region2: #{phs_func.1} parent=0 // pred_check
    _
  $region3: #{phs_func.1} parent=0 // pred_check_branch
    %10 = sbr.rel (0) target = $region5
  $region4: #{phs_func.1} parent=0 // pred_region
    _
  $region5: #{phs_func.1} parent=0 // pred_fallthru
    _
  // Predicated region
  $region6: #{phs_func.1} parent=0 // pred_check
    _
  $region7: #{phs_func.1} parent=0 // pred_check_branch
    %12 = sbr.rel (0) target = $region9
  $region8: #{phs_func.1} parent=0 // pred_region
    _
  $region9: #{phs_func.1} parent=0 // pred_fallthru
    _
  // Predicated region
  $region10: #{phs_func.1} parent=0 // pred_check
    _
  $region11: #{phs_func.1} parent=0 // pred_check_branch
    %14 = sbr.rel (0) target = $region13
  $region12: #{phs_func.1} parent=0 // pred_region
    _
  $region13: #{phs_func.1} parent=0 // pred_fallthru
    _
  %s15 = sld [smem:[#allocation2]]
  %v16 = vld [vmem:[%s2] sm:$0x1]
  %v17 = vld [vmem:[%s2 + $0x1] sm:$0x1]
  %v18 = vld [vmem:[%s0] sm:$0xff]
  %v19 = vld [vmem:[%s0 + $0x28] sm:$0xff]
  %v20 = vld [vmem:[%s0 + $0x50] sm:$0xff]
  %v21 = vld [vmem:[%s0 + $0x78] sm:$0xff]
  %v22 = vld [vmem:[%s0 + $0xa0] sm:$0xff]
  %v23 = vld [vmem:[%s0 + $0xc8] sm:$0xff]
  %v24 = vld [vmem:[%s0 + $0xf0] sm:$0xff]
  %v25 = vld [vmem:[%s0 + $0x118] sm:$0xff]
  %v26 = vld [vmem:[%s0 + $0x140] sm:$0xff]
  %v27 = vld [vmem:[%s0 + $0x168] sm:$0xff]
  %v28 = vld [vmem:[%s0 + $0x8] sm:$0xff]
  %v29 = vld [vmem:[%s0 + $0x30] sm:$0xff]
  %v30 = vld [vmem:[%s0 + $0x58] sm:$0xff]
  %v31 = vld [vmem:[%s0 + $0x80] sm:$0xff]
  %v32 = vld [vmem:[%s0 + $0xa8] sm:$0xff]
  %v33 = vld [vmem:[%s0 + $0xd0] sm:$0xff]
  %v34 = vld [vmem:[%s0 + $0xf8] sm:$0xff]
  %v35 = vld [vmem:[%s0 + $0x120] sm:$0xff]
  %v36 = vld [vmem:[%s0 + $0x148] sm:$0xff]
  %v37 = vld [vmem:[%s0 + $0x170] sm:$0xff]
  %v38 = vld [vmem:[%s0 + $0x10] sm:$0xff]
  %v39 = vld [vmem:[%s0 + $0x38] sm:$0xff]
  %v40 = vld [vmem:[%s0 + $0x60] sm:$0xff]
  %v41 = vld [vmem:[%s0 + $0x88] sm:$0xff]
  %v42 = vld [vmem:[%s0 + $0xb0] sm:$0xff]
  %v43 = vld [vmem:[%s0 + $0xd8] sm:$0xff]
  %v44 = vld [vmem:[%s0 + $0x100] sm:$0xff]
  %v45 = vld [vmem:[%s0 + $0x128] sm:$0xff]
  %v46 = vld [vmem:[%s0 + $0x150] sm:$0xff]
  %v47 = vld [vmem:[%s0 + $0x178] sm:$0xff]
  %v48 = vld [vmem:[%s0 + $0x18] sm:$0xff]
  %v49 = vld [vmem:[%s0 + $0x40] sm:$0xff]
  %v50 = vld [vmem:[%s0 + $0x68] sm:$0xff]
  %v51 = vld [vmem:[%s0 + $0x90] sm:$0xff]
  %v52 = vld [vmem:[%s0 + $0xb8] sm:$0xff]
  %v53 = vld [vmem:[%s0 + $0xe0] sm:$0xff]
  %v54 = vld [vmem:[%s0 + $0x108] sm:$0xff]
  %v55 = vld [vmem:[%s0 + $0x130] sm:$0xff]
  %v56 = vld [vmem:[%s0 + $0x158] sm:$0xff]
  %v57 = vld [vmem:[%s0 + $0x180] sm:$0xff]
  %v58 = vld [vmem:[%s0 + $0x20] sm:$0xff]
  %v59 = vld [vmem:[%s0 + $0x48] sm:$0xff]
  %v60 = vld [vmem:[%s0 + $0x70] sm:$0xff]
  %v61 = vld [vmem:[%s0 + $0x98] sm:$0xff]
  %v62 = vld [vmem:[%s0 + $0xc0] sm:$0xff]
  %v63 = vld [vmem:[%s0 + $0xe8] sm:$0xff]
  %v64 = vld [vmem:[%s0 + $0x110] sm:$0xff]
  %v65 = vld [vmem:[%s0 + $0x138] sm:$0xff]
  %v66 = vld [vmem:[%s0 + $0x160] sm:$0xff]
  %v67 = vld [vmem:[%s0 + $0x188] sm:$0xff]
  %v68 = vperm.slane %v16, 0
  %v69 = vmul.f32 %v18, %v68
  %v70 = vmul.f32 %v19, %v68
  %v71 = vmul.f32 %v20, %v68
  %v72 = vmul.f32 %v21, %v68
  %v73 = vmul.f32 %v22, %v68
  %v74 = vmul.f32 %v23, %v68
  %v75 = vmul.f32 %v24, %v68
  %v76 = vmul.f32 %v25, %v68
  %v77 = vmul.f32 %v26, %v68
  %v78 = vmul.f32 %v27, %v68
  %v79 = vperm.slane %v17, 0
  %v80 = vmul.f32 %v28, %v79
  %v81 = vmul.f32 %v29, %v79
  %v82 = vmul.f32 %v30, %v79
  %v83 = vmul.f32 %v31, %v79
  %v84 = vmul.f32 %v32, %v79
  %v85 = vmul.f32 %v33, %v79
  %v86 = vmul.f32 %v34, %v79
  %v87 = vmul.f32 %v35, %v79
  %v88 = vmul.f32 %v36, %v79
  %v89 = vmul.f32 %v37, %v79
  %v90 = vadd.f32 %v69, %v80
  %v91 = vadd.f32 %v70, %v81
  %v92 = vadd.f32 %v71, %v82
  %v93 = vadd.f32 %v72, %v83
  %v94 = vadd.f32 %v73, %v84
  %v95 = vadd.f32 %v74, %v85
  %v96 = vadd.f32 %v75, %v86
  %v97 = vadd.f32 %v76, %v87
  %v98 = vadd.f32 %v77, %v88
  %v99 = vadd.f32 %v78, %v89
  %v100 = vadd.f32 %v90, %v38
  %v101 = vadd.f32 %v91, %v39
  %v102 = vadd.f32 %v92, %v40
  %v103 = vadd.f32 %v93, %v41
  %v104 = vadd.f32 %v94, %v42
  %v105 = vadd.f32 %v95, %v43
  %v106 = vadd.f32 %v96, %v44
  %v107 = vadd.f32 %v97, %v45
  %v108 = vadd.f32 %v98, %v46
  %v109 = vadd.f32 %v99, %v47
  %v110 = vtanh.pop %v100
  %v111 = vtanh.pop %v101
  %v112 = vtanh.pop %v102
  %v113 = vtanh.pop %v103
  %v114 = vtanh.pop %v104
  %v115 = vtanh.pop %v105
  %v116 = vtanh.pop %v106
  %v117 = vtanh.pop %v107
  %v118 = vtanh.pop %v108
  %v119 = vtanh.pop %v109
  %v120 = vmul.f32 %v110, %v110
  %v121 = vmul.f32 %v111, %v111
  %v122 = vmul.f32 %v112, %v112
  %v123 = vmul.f32 %v113, %v113
  %v124 = vmul.f32 %v114, %v114
  %v125 = vmul.f32 %v115, %v115
  %v126 = vmul.f32 %v116, %v116
  %v127 = vmul.f32 %v117, %v117
  %v128 = vmul.f32 %v118, %v118
  %v129 = vmul.f32 %v119, %v119
  %v130 = vsub.f32 1.0, %v120
  %v131 = vsub.f32 1.0, %v121
  %v132 = vsub.f32 1.0, %v122
  %v133 = vsub.f32 1.0, %v123
  %v134 = vsub.f32 1.0, %v124
  %v135 = vsub.f32 1.0, %v125
  %v136 = vsub.f32 1.0, %v126
  %v137 = vsub.f32 1.0, %v127
  %v138 = vsub.f32 1.0, %v128
  %v139 = vsub.f32 1.0, %v129
  %v140 = vmul.f32 %v130, %v48
  %v141 = vmul.f32 %v131, %v49
  %v142 = vmul.f32 %v132, %v50
  %v143 = vmul.f32 %v133, %v51
  %v144 = vmul.f32 %v134, %v52
  %v145 = vmul.f32 %v135, %v53
  %v146 = vmul.f32 %v136, %v54
  %v147 = vmul.f32 %v137, %v55
  %v148 = vmul.f32 %v138, %v56
  %v149 = vmul.f32 %v139, %v57
  %v150 = vmul.f32 %v140, %v18
  %v151 = vmul.f32 %v141, %v19
  %v152 = vmul.f32 %v142, %v20
  %v153 = vmul.f32 %v143, %v21
  %v154 = vmul.f32 %v144, %v22
  %v155 = vmul.f32 %v145, %v23
  %v156 = vmul.f32 %v146, %v24
  %v157 = vmul.f32 %v147, %v25
  %v158 = vmul.f32 %v148, %v26
  %v159 = vmul.f32 %v149, %v27
  %v160 = vadd.f32 %v150, %v151
  %v161 = vadd.f32 %v160, %v152
  %v162 = vadd.f32 %v161, %v153
  %v163 = vadd.f32 %v162, %v154
  %v164 = vadd.f32 %v163, %v155
  %v165 = vadd.f32 %v164, %v156
  %v166 = vadd.f32 %v165, %v157
  %v167 = vadd.f32 %v166, %v158
  %v168 = vadd.f32 %v167, %v159
  %v169 = vrot.slane %v168, 4
  %v170 = vadd.f32 %v168, %v169
  %v171 = vrot.slane %v170, 2
  %v172 = vadd.f32 %v170, %v171
  %v173 = vrot.slane %v172, 1
  %v174 = vadd.f32 %v172, %v173
  %v175 = vmul.f32 %v140, %v28
  %v176 = vmul.f32 %v141, %v29
  %v177 = vmul.f32 %v142, %v30
  %v178 = vmul.f32 %v143, %v31
  %v179 = vmul.f32 %v144, %v32
  %v180 = vmul.f32 %v145, %v33
  %v181 = vmul.f32 %v146, %v34
  %v182 = vmul.f32 %v147, %v35
  %v183 = vmul.f32 %v148, %v36
  %v184 = vmul.f32 %v149, %v37
  %v185 = vadd.f32 %v175, %v176
  %v186 = vadd.f32 %v185, %v177
  %v187 = vadd.f32 %v186, %v178
  %v188 = vadd.f32 %v187, %v179
  %v189 = vadd.f32 %v188, %v180
  %v190 = vadd.f32 %v189, %v181
  %v191 = vadd.f32 %v190, %v182
  %v192 = vadd.f32 %v191, %v183
  %v193 = vadd.f32 %v192, %v184
  %v194 = vrot.slane %v193, 4
  %v195 = vadd.f32 %v193, %v194
  %v196 = vrot.slane %v195, 2
  %v197 = vadd.f32 %v195, %v196
  %v198 = vrot.slane %v197, 1
  %v199 = vadd.f32 %v197, %v198
  %v200 = vmul.f32 %v110, %v58
  %v201 = vmul.f32 %v111, %v59
  %v202 = vmul.f32 %v112, %v60
  %v203 = vmul.f32 %v113, %v61
  %v204 = vmul.f32 %v114, %v62
  %v205 = vmul.f32 %v115, %v63
  %v206 = vmul.f32 %v116, %v64
  %v207 = vmul.f32 %v117, %v65
  %v208 = vmul.f32 %v118, %v66
  %v209 = vmul.f32 %v119, %v67
  %v210 = vadd.f32 %v200, %v201
  %v211 = vadd.f32 %v210, %v202
  %v212 = vadd.f32 %v211, %v203
  %v213 = vadd.f32 %v212, %v204
  %v214 = vadd.f32 %v213, %v205
  %v215 = vadd.f32 %v214, %v206
  %v216 = vadd.f32 %v215, %v207
  %v217 = vadd.f32 %v216, %v208
  %v218 = vadd.f32 %v217, %v209
  %v219 = vrot.slane %v218, 4
  %v220 = vadd.f32 %v218, %v219
  %v221 = vrot.slane %v220, 2
  %v222 = vadd.f32 %v220, %v221
  %v223 = vrot.slane %v222, 1
  %v224 = vadd.f32 %v222, %v223
  %v225 = vstv %s15
  %v226 = vadd.f32 %v224, %v225
  %227 = vst [vmem:[%s3] sm:$0x1] %v199
  %v228 = vsub.f32 0.0, %v174
  %v229 = vmul.f32 %v226, %v226
  %v230 = vmul.f32 %v229, %v199
  %v231 = vsub.f32 %v228, %v230
  %232 = vst [vmem:[%s3 + $0x1] sm:$0x1] %v231
  // Predicated region
  $region14: #{phs_func.1} parent=0 // pred_check
    _
  $region15: #{phs_func.1} parent=0 // pred_check_branch
    %234 = sbr.rel (0) target = $region17
  $region16: #{phs_func.1} parent=0 // pred_region
    _
  $region17: #{phs_func.1} parent=0 // pred_fallthru
    _
  // Predicated region
  $region18: #{phs_func.1} parent=0 // pred_check
    _
  $region19: #{phs_func.1} parent=0 // pred_check_branch
    %236 = sbr.rel (0) target = $region21
  $region20: #{phs_func.1} parent=0 // pred_region
    _
  $region21: #{phs_func.1} parent=0 // pred_fallthru
    _

</llo_original>
